<compile_context>
chip_gen: v7x
topology: tpu7x:2x2x1
jax: 0.10.0
libtpu: 0.0.40
codegen_flags: <defaults>
</compile_context>

<pallas_src>
import functools

import jax
import jax.numpy as jnp
from jax.experimental import pallas as pl
from jax.experimental.pallas import tpu as pltpu


def _round_up(x, m):
    return ((x + m - 1) // m) * m


def _encoder_kernel(patches_ref, w_pe_ref, b_pe_ref, w_proj_ref, b_proj_ref, out_ref):
    # patches_ref: (TM, P_pad)    bf16  streamed row tile of flattened patches
    # w_pe_ref:    (P_pad, H_pad) bf16  resident patch-embedding weight (W.T)
    # b_pe_ref:    (1, H_pad)     f32   resident bias
    # w_proj_ref:  (H_pad, E_pad) bf16  resident cv_proj weight (W.T)
    # b_proj_ref:  (1, E_pad)     f32   resident bias
    # out_ref:     (TM, E_pad)    f32   streamed output tile (lane-dense)
    hidden = jnp.dot(patches_ref[...], w_pe_ref[...],
                     preferred_element_type=jnp.float32) + b_pe_ref[...]
    out = jnp.dot(hidden.astype(jnp.bfloat16), w_proj_ref[...],
                  preferred_element_type=jnp.float32) + b_proj_ref[...]
    out_ref[...] = out.astype(out_ref.dtype)


def _pick_tm(M, P_pad, H_pad, E_pad, budget_bytes):
    """Largest row tile (512/256/128, mult of 8) whose VMEM footprint fits."""
    resident = (2 * (P_pad * H_pad + H_pad * E_pad) * 2    # bf16 weights (dbl-buf slot)
                + 2 * (H_pad + E_pad) * 4)                 # f32 biases
    for tm in (512, 256, 128):
        streamed = (2 * tm * P_pad * 2        # patch tiles, bf16, double-buffered
                    + 2 * tm * E_pad * 4      # out tiles, f32, double-buffered
                    + tm * max(H_pad, E_pad) * 4)  # live f32 intermediate
        if resident + streamed <= budget_bytes:
            return tm
    return 128


def vision_encoder(item_content, params, patch_size):
    """item_content: (B, C, H, W) NCHW float32.  Returns (B, S, embedding_dim)."""
    w_pe, b_pe, w_proj, b_proj = (params["w_pe"], params["b_pe"],
                                  params["w_proj"], params["b_proj"])
    B, C, H, W = item_content.shape
    p = patch_size
    nh, nw = H // p, W // p
    S = nh * nw
    P = C * p * p
    M = B * S
    hidden_dim = w_pe.shape[0]     # torch conv/linear weight is (out, in)
    emb_dim = w_proj.shape[0]

    # --- glue: unfold NCHW image into patches, (C, p, p) flattening order ---
    # (allow_input_fusion lets XLA fuse this transpose into the pallas_call producer)
    x = item_content.reshape(B, C, nh, p, nw, p)
    x = jnp.transpose(x, (0, 2, 4, 1, 3, 5))            # (B, nh, nw, C, p, p)
    patches = x.reshape(M, P)                            # (M, P)

    # --- pad to TPU-friendly sizes (multiples of 128 on lane/K dims) ---
    P_pad = _round_up(P, 128)
    H_pad = _round_up(hidden_dim, 128)
    E_pad = _round_up(emb_dim, 128)

    budget = 40 * 1024 * 1024                            # fits v7x's 64 MiB VMEM too
    TM = _pick_tm(M, P_pad, H_pad, E_pad, budget)
    TM = min(TM, _round_up(M, 8))                        # don't over-tile tiny inputs
    M_pad = _round_up(M, TM)
    grid = (M_pad // TM,)

    patches_p = jnp.pad(patches.astype(jnp.bfloat16),
                        ((0, M_pad - M), (0, P_pad - P)))
    w_pe_t = jnp.pad(w_pe.T.astype(jnp.bfloat16),
                     ((0, P_pad - P), (0, H_pad - hidden_dim)))
    w_proj_t = jnp.pad(w_proj.T.astype(jnp.bfloat16),
                       ((0, H_pad - hidden_dim), (0, E_pad - emb_dim)))
    b_pe_p = jnp.pad(b_pe.astype(jnp.float32),
                     (0, H_pad - hidden_dim)).reshape(1, H_pad)
    b_proj_p = jnp.pad(b_proj.astype(jnp.float32),
                       (0, E_pad - emb_dim)).reshape(1, E_pad)

    # --- explicit VMEM budget from the real footprint (with headroom) ---
    vmem_need = (
        2 * TM * P_pad * 2                         # patch tiles (bf16, double-buffered)
        + 2 * TM * E_pad * 4                       # out tiles (f32, double-buffered)
        + 2 * (P_pad * H_pad + H_pad * E_pad) * 2  # resident weights (bf16)
        + 2 * (H_pad + E_pad) * 4                  # resident biases (f32)
        + 2 * TM * max(H_pad, E_pad) * 4           # live intermediates
    )
    vmem_limit = int(min(max(2 * vmem_need, 16 * 1024 * 1024), 48 * 1024 * 1024))

    out = pl.pallas_call(
        _encoder_kernel,
        out_shape=jax.ShapeDtypeStruct((M_pad, E_pad), item_content.dtype),
        grid_spec=pltpu.PrefetchScalarGridSpec(
            num_scalar_prefetch=0,
            grid=grid,
            in_specs=[
                pl.BlockSpec((TM, P_pad), lambda i: (i, 0)),        # streamed patches
                pl.BlockSpec((P_pad, H_pad), lambda i: (0, 0)),     # resident
                pl.BlockSpec((1, H_pad), lambda i: (0, 0)),         # resident
                pl.BlockSpec((H_pad, E_pad), lambda i: (0, 0)),     # resident
                pl.BlockSpec((1, E_pad), lambda i: (0, 0)),         # resident
            ],
            out_specs=pl.BlockSpec((TM, E_pad), lambda i: (i, 0)),  # lane-dense output
        ),
        compiler_params=pltpu.CompilerParams(
            dimension_semantics=("parallel",),
            vmem_limit_bytes=vmem_limit,
            allow_input_fusion=[True, False, False, False, False],
        ),
    )(patches_p, w_pe_t, b_pe_p, w_proj_t, b_proj_p)

    return out[:M, :emb_dim].reshape(B, S, emb_dim)


def init_params(key, in_channels, patch_size, word_embedding_dim, embedding_dim):
    """Deterministic synthetic parameters.

    cv_proj follows the PyTorch init exactly: xavier_normal_(weight), bias = 0.
    The backbone patch-embedding stand-in uses a small deterministic normal.
    """
    k_pe, k_proj = jax.random.split(key)
    P = in_channels * patch_size * patch_size

    # backbone patch-embedding weight: torch Conv2d weight (hidden, C, p, p) flattened
    w_pe = 0.02 * jax.random.normal(k_pe, (word_embedding_dim, P), dtype=jnp.float32)
    b_pe = jnp.zeros((word_embedding_dim,), dtype=jnp.float32)

    # cv_proj: nn.Linear(word_embedding_dim, embedding_dim)
    fan_in, fan_out = word_embedding_dim, embedding_dim
    xavier_std = (2.0 / (fan_in + fan_out)) ** 0.5
    w_proj = xavier_std * jax.random.normal(
        k_proj, (embedding_dim, word_embedding_dim), dtype=jnp.float32)
    b_proj = jnp.zeros((embedding_dim,), dtype=jnp.float32)   # constant_(bias, 0)

    return {"w_pe": w_pe, "b_pe": b_pe, "w_proj": w_proj, "b_proj": b_proj}


if __name__ == "__main__":
    # small shapes: batch=2, channels=4, spatial=16, patch=4 -> seq=16,
    # word_embedding_dim=32, embedding_dim=32
    B, C, Hs, Ws = 2, 4, 16, 16
    patch = 4
    word_embedding_dim = 32
    embedding_dim = 32

    key = jax.random.PRNGKey(0)
    k_x, k_p = jax.random.split(key)
    item_content = jax.random.normal(k_x, (B, C, Hs, Ws), dtype=jnp.float32)
    params = init_params(k_p, C, patch, word_embedding_dim, embedding_dim)

    encoder = jax.jit(functools.partial(vision_encoder, patch_size=patch))
    out = jax.block_until_ready(encoder(item_content, params))

    # --- references ---
    x = item_content.reshape(B, C, Hs // patch, patch, Ws // patch, patch)
    x = jnp.transpose(x, (0, 2, 4, 1, 3, 5)).reshape(B, -1, C * patch * patch)

    # full-f32 reference (module semantics)
    hidden_f32 = x @ params["w_pe"].T + params["b_pe"]
    out_f32 = hidden_f32 @ params["w_proj"].T + params["b_proj"]

    # bf16-matched reference (same cast points as the kernel, f32 accumulation)
    h_bf = jnp.dot(x.astype(jnp.bfloat16), params["w_pe"].T.astype(jnp.bfloat16),
                   preferred_element_type=jnp.float32) + params["b_pe"]
    out_bf = jnp.dot(h_bf.astype(jnp.bfloat16), params["w_proj"].T.astype(jnp.bfloat16),
                     preferred_element_type=jnp.float32) + params["b_proj"]

    assert out.shape == (B, (Hs // patch) * (Ws // patch), embedding_dim)
    assert jnp.allclose(out, out_bf, atol=2e-3, rtol=2e-3), "mismatch vs bf16-matched reference"
    assert jnp.allclose(out, out_f32, atol=3e-2, rtol=3e-2), "mismatch vs f32 reference"

    print("KERNEL_OK")
</pallas_src>

<mosaic_0001>
module attributes {stable_mosaic.version = 11 : i64} {
  func.func @_encoder_kernel(%arg0: i32, %arg1: memref<32x128xbf16, #tpu.memory_space<vmem>>, %arg2: memref<128x128xbf16, #tpu.memory_space<vmem>>, %arg3: memref<1x128xf32, #tpu.memory_space<vmem>>, %arg4: memref<128x128xbf16, #tpu.memory_space<vmem>>, %arg5: memref<1x128xf32, #tpu.memory_space<vmem>>, %arg6: memref<32x128xf32, #tpu.memory_space<vmem>>) attributes {dimension_semantics = [#tpu.dimension_semantics<parallel>], iteration_bounds = array<i64: 1>, scalar_prefetch = 0 : i64, scratch_operands = 0 : i64, tpu.core_type = #tpu.core_type<tc>, window_params = [{transform_indices = @transform_0, window_bounds = array<i64: 32, 128>}, {pipeline_mode = #tpu.pipeline_mode<synchronous>, transform_indices = @transform_1, window_bounds = array<i64: 128, 128>}, {pipeline_mode = #tpu.pipeline_mode<synchronous>, transform_indices = @transform_2, window_bounds = array<i64: 1, 128>}, {pipeline_mode = #tpu.pipeline_mode<synchronous>, transform_indices = @transform_3, window_bounds = array<i64: 128, 128>}, {pipeline_mode = #tpu.pipeline_mode<synchronous>, transform_indices = @transform_4, window_bounds = array<i64: 1, 128>}, {transform_indices = @transform_5, window_bounds = array<i64: 32, 128>}]} {
    %c0 = arith.constant 0 : index
    %c0_0 = arith.constant 0 : index
    %0 = vector.load %arg1[%c0, %c0_0] : memref<32x128xbf16, #tpu.memory_space<vmem>>, vector<32x128xbf16>
    %c0_1 = arith.constant 0 : index
    %c0_2 = arith.constant 0 : index
    %1 = vector.load %arg2[%c0_1, %c0_2] : memref<128x128xbf16, #tpu.memory_space<vmem>>, vector<128x128xbf16>
    %cst = arith.constant dense<0.000000e+00> : vector<32x128xf32>
    %2 = tpu.matmul %0, %1, %cst {dimension_numbers = #tpu.dot_dimension_numbers<[1], [0], [0], [1], [0, 0, 1, 1], [], []>} : vector<32x128xbf16>, vector<128x128xbf16>, vector<32x128xf32> -> vector<32x128xf32>
    %c0_3 = arith.constant 0 : index
    %c0_4 = arith.constant 0 : index
    %3 = vector.load %arg3[%c0_3, %c0_4] : memref<1x128xf32, #tpu.memory_space<vmem>>, vector<1x128xf32>
    %4 = vector.broadcast %3 : vector<1x128xf32> to vector<32x128xf32>
    %5 = arith.addf %2, %4 : vector<32x128xf32>
    %6 = arith.truncf %5 : vector<32x128xf32> to vector<32x128xbf16>
    %c0_5 = arith.constant 0 : index
    %c0_6 = arith.constant 0 : index
    %7 = vector.load %arg4[%c0_5, %c0_6] : memref<128x128xbf16, #tpu.memory_space<vmem>>, vector<128x128xbf16>
    %cst_7 = arith.constant dense<0.000000e+00> : vector<32x128xf32>
    %8 = tpu.matmul %6, %7, %cst_7 {dimension_numbers = #tpu.dot_dimension_numbers<[1], [0], [0], [1], [0, 0, 1, 1], [], []>} : vector<32x128xbf16>, vector<128x128xbf16>, vector<32x128xf32> -> vector<32x128xf32>
    %c0_8 = arith.constant 0 : index
    %c0_9 = arith.constant 0 : index
    %9 = vector.load %arg5[%c0_8, %c0_9] : memref<1x128xf32, #tpu.memory_space<vmem>>, vector<1x128xf32>
    %10 = vector.broadcast %9 : vector<1x128xf32> to vector<32x128xf32>
    %11 = arith.addf %8, %10 : vector<32x128xf32>
    %c0_10 = arith.constant 0 : index
    %c0_11 = arith.constant 0 : index
    %12 = vector.load %arg6[%c0_10, %c0_11] : memref<32x128xf32, #tpu.memory_space<vmem>>, vector<32x128xf32>
    tpu.vector_store %arg6[%c0_10, %c0_11], %11 {strides = array<i32>} : memref<32x128xf32, #tpu.memory_space<vmem>>, vector<32x128xf32>,
    return
  }
  func.func @transform_0(%arg0: i32) -> (i32, i32) {
    %c0_i32 = arith.constant 0 : i32
    %c0_i32_0 = arith.constant 0 : i32
    return %arg0, %c0_i32 : i32, i32
  }
  func.func @transform_1(%arg0: i32) -> (i32, i32) {
    %c0_i32 = arith.constant 0 : i32
    %c0_i32_0 = arith.constant 0 : i32
    %c0_i32_1 = arith.constant 0 : i32
    return %c0_i32, %c0_i32_0 : i32, i32
  }
  func.func @transform_2(%arg0: i32) -> (i32, i32) {
    %c0_i32 = arith.constant 0 : i32
    %c0_i32_0 = arith.constant 0 : i32
    %c0_i32_1 = arith.constant 0 : i32
    return %c0_i32, %c0_i32_0 : i32, i32
  }
  func.func @transform_3(%arg0: i32) -> (i32, i32) {
    %c0_i32 = arith.constant 0 : i32
    %c0_i32_0 = arith.constant 0 : i32
    %c0_i32_1 = arith.constant 0 : i32
    return %c0_i32, %c0_i32_0 : i32, i32
  }
  func.func @transform_4(%arg0: i32) -> (i32, i32) {
    %c0_i32 = arith.constant 0 : i32
    %c0_i32_0 = arith.constant 0 : i32
    %c0_i32_1 = arith.constant 0 : i32
    return %c0_i32, %c0_i32_0 : i32, i32
  }
  func.func @transform_5(%arg0: i32) -> (i32, i32) {
    %c0_i32 = arith.constant 0 : i32
    %c0_i32_0 = arith.constant 0 : i32
    return %arg0, %c0_i32 : i32, i32
  }
}

</mosaic_0001>

<llo_original>
// kernel: vision_encoder.2
$region0: #{vision_encoder.2}
  #allocation0 [shape = 'u32[]', space=smem, size = 0x4, offset = 0x4, fixed_abs, tag = 'smem constant byte address 0x4 - core index']
  #allocation1 [shape = 'u32[144,128]{1,0:T(1,128)}', space=vmem, size = 0x12000, scoped, tag = 'internal scratch']
  #allocation2 [shape = 'u32[2048]{0}', space=vmem, size = 0x2000, scoped, tag = 'scoped memory for vision_encoder.2']
  #allocation3 [shape = 'u32[2048]{0}', space=vmem, size = 0x2000, scoped, tag = 'scoped memory for vision_encoder.2']
  #allocation4 [shape = 'u32[2048]{0}', space=vmem, size = 0x2000, scoped, tag = 'scoped memory for vision_encoder.2']
  #allocation5 [shape = 'u32[2048]{0}', space=vmem, size = 0x2000, scoped, tag = 'scoped memory for vision_encoder.2']
  #allocation6 [shape = 'u32[2048]{0}', space=vmem, size = 0x2000, scoped, tag = 'scoped memory for vision_encoder.2']
  %s0 = inlined_call_operand.vmem [shape: bf16[128,128], index: 0, kind: input, shape index: {}]
  %s1 = inlined_call_operand.vmem [shape: f32[1,128], index: 1, kind: input, shape index: {}]
  %s2 = inlined_call_operand.vmem [shape: bf16[128,128], index: 2, kind: input, shape index: {}]
  %s3 = inlined_call_operand.vmem [shape: f32[1,128], index: 3, kind: input, shape index: {}]
  %s4 = inlined_call_operand.vmem [shape: bf16[32,64], index: 4, kind: input, shape index: {}]
  %s5 = inlined_call_operand.<no memory space> [shape: bf16[], index: 5, kind: input, shape index: {}]
  %s6 = inlined_call_operand.hbm [shape: f32[32,128], index: 6, kind: output, shape index: {}]
  %s7 = sld [smem:[#allocation0]]
  $region30: #{vision_encoder.2} parent=0
    _
  %s9 = ssub.s32 1, %s7
  %s10 = scalar_select 0, %s9, %s7
  %v11 = vstv %s5
  %v12 = vunpack.i.l.bf16 %v11
  %v14 = vunpack.i.h.bf16 %v11
  $region1: #{vision_encoder.2} parent=0
    #allocation7 [shape = 'u8[16384]{0}', space=vmem, size = 0x4000, scoped, tag = 'output window, operand 0, single buffered']
    #allocation8 [shape = 's32[1]{0}', space=sflag, size = 0x4, scoped, tag = 'scoped memory for vision_encoder.2']
    #allocation9 [shape = 'u8[8192]{0}', space=vmem, size = 0x2000, dematerialized = true, scoped, tag = 'FusionAdapter Buffer %fusion.1 = bf16[32,128]{1,0:T(8,128)(2,1)} fusion(%param_4.1, %param_5), kind=kLoop, calls=%fused_computation.3.clone, metadata={op_name="jit(vision_encoder)/jit(_pad)/pad" stack_frame_id=11}']
    %16 = vsyncpa [#allocation8], 0
    // Predicated region
    $region2: #{vision_encoder.2} parent=1 // pred_check
      _
    $region3: #{vision_encoder.2} parent=1 // pred_check_branch
      %18 = sbr.rel (0) target = $region5
    $region4: #{vision_encoder.2} parent=1 // pred_region
      _
    $region5: #{vision_encoder.2} parent=1 // pred_fallthru
      _
    // Predicated region
    $region6: #{vision_encoder.2} parent=1 // pred_check
      _
    $region7: #{vision_encoder.2} parent=1 // pred_check_branch
      %20 = sbr.rel (0) target = $region9
    $region8: #{vision_encoder.2} parent=1 // pred_region
      _
    $region9: #{vision_encoder.2} parent=1 // pred_fallthru
      _
    // Predicated region
    $region10: #{vision_encoder.2} parent=1 // pred_check
      _
    $region11: #{vision_encoder.2} parent=1 // pred_check_branch
      %22 = sbr.rel (0) target = $region13
    $region12: #{vision_encoder.2} parent=1 // pred_region
      _
    $region13: #{vision_encoder.2} parent=1 // pred_fallthru
      _
    // Predicated region
    $region14: #{vision_encoder.2} parent=1 // pred_check
      _
    $region15: #{vision_encoder.2} parent=1 // pred_check_branch
      %24 = sbr.rel (0) target = $region17
    $region16: #{vision_encoder.2} parent=1 // pred_region
      _
    $region17: #{vision_encoder.2} parent=1 // pred_fallthru
      _
    // Predicated region
    $region18: #{vision_encoder.2} parent=1 // pred_check
      _
    $region19: #{vision_encoder.2} parent=1 // pred_check_branch
      %26 = sbr.rel (0) target = $region21
    $region20: #{vision_encoder.2} parent=1 // pred_region
      _
    $region21: #{vision_encoder.2} parent=1 // pred_fallthru
      _
    %s28 = sor.u32 255, 127
    %s29 = sand.u32 %s28, 85
    %s30 = sshrl.u32 %s29, 1
    %s31 = sor.u32 %s29, %s30
    %s32 = sand.u32 51, %s31
    %s33 = sshrl.u32 %s32, 2
    %s34 = sor.u32 %s32, %s33
    %s35 = sand.u32 15, %s34
    %v36 = vld [vmem:[%s4] sm:%s35]
    %v37 = vunpack.c.l.bf16 %v36
    %v38 = vunpack.c.h.bf16 %v36
    %v39 = vlaneseq
    %v40 = vand.u32 %v39, 127
    %vm42 = vcmp.lt.s32.totalorder %v40, 64
    %v43 = vsel %vm42, %v37, %v12
    %v44 = vpack.c.bf16 0.0, %v43
    %46 = vst [vmem:[#allocation9] sm:$0xf] %v44
    %s47 = scalar_lea.vmem %s4, 4
    %s49 = sor.u32 255, 127
    %s50 = sand.u32 %s49, 85
    %s51 = sshrl.u32 %s50, 1
    %s52 = sor.u32 %s50, %s51
    %s53 = sand.u32 51, %s52
    %s54 = sshrl.u32 %s53, 2
    %s55 = sor.u32 %s53, %s54
    %s56 = sand.u32 15, %s55
    %v57 = vld [vmem:[%s47] sm:%s56]
    %v58 = vunpack.c.l.bf16 %v57
    %v59 = vunpack.c.h.bf16 %v57
    %v60 = vlaneseq
    %v61 = vand.u32 %v60, 127
    %vm63 = vcmp.lt.s32.totalorder %v61, 64
    %v64 = vsel %vm63, %v58, %v12
    %s65 = scalar_lea.vmem [#allocation9], 4
    %v66 = vpack.c.bf16 0.0, %v64
    %68 = vst [vmem:[%s65] sm:$0xf] %v66
    %s69 = scalar_lea.vmem %s4, 8
    %s71 = sor.u32 255, 127
    %s72 = sand.u32 %s71, 85
    %s73 = sshrl.u32 %s72, 1
    %s74 = sor.u32 %s72, %s73
    %s75 = sand.u32 51, %s74
    %s76 = sshrl.u32 %s75, 2
    %s77 = sor.u32 %s75, %s76
    %s78 = sand.u32 15, %s77
    %v79 = vld [vmem:[%s69] sm:%s78]
    %v80 = vunpack.c.l.bf16 %v79
    %v81 = vunpack.c.h.bf16 %v79
    %v82 = vlaneseq
    %v83 = vand.u32 %v82, 127
    %vm85 = vcmp.lt.s32.totalorder %v83, 64
    %v86 = vsel %vm85, %v80, %v12
    %s87 = scalar_lea.vmem [#allocation9], 8
    %v88 = vpack.c.bf16 0.0, %v86
    %90 = vst [vmem:[%s87] sm:$0xf] %v88
    %s91 = scalar_lea.vmem %s4, 12
    %s93 = sor.u32 255, 127
    %s94 = sand.u32 %s93, 85
    %s95 = sshrl.u32 %s94, 1
    %s96 = sor.u32 %s94, %s95
    %s97 = sand.u32 51, %s96
    %s98 = sshrl.u32 %s97, 2
    %s99 = sor.u32 %s97, %s98
    %s100 = sand.u32 15, %s99
    %v101 = vld [vmem:[%s91] sm:%s100]
    %v102 = vunpack.c.l.bf16 %v101
    %v103 = vunpack.c.h.bf16 %v101
    %v104 = vlaneseq
    %v105 = vand.u32 %v104, 127
    %vm107 = vcmp.lt.s32.totalorder %v105, 64
    %v108 = vsel %vm107, %v102, %v12
    %s109 = scalar_lea.vmem [#allocation9], 12
    %v110 = vpack.c.bf16 0.0, %v108
    %112 = vst [vmem:[%s109] sm:$0xf] %v110
    %v114 = vld [vmem:[#allocation9] sm:$0xf]
    %v115 = vld [vmem:[#allocation9 + $0x4] sm:$0xf]
    %v116 = vld [vmem:[#allocation9 + $0x8] sm:$0xf]
    %v117 = vld [vmem:[#allocation9 + $0xc] sm:$0xf]
    %v118 = vld [vmem:[%s0] sm:$0xf]
    %v119 = vld [vmem:[%s0 + $0x4] sm:$0xf]
    %v120 = vld [vmem:[%s0 + $0x8] sm:$0xf]
    %v121 = vld [vmem:[%s0 + $0xc] sm:$0xf]
    %v122 = vld [vmem:[%s0 + $0x10] sm:$0xf]
    %v123 = vld [vmem:[%s0 + $0x14] sm:$0xf]
    %v124 = vld [vmem:[%s0 + $0x18] sm:$0xf]
    %v125 = vld [vmem:[%s0 + $0x1c] sm:$0xf]
    %v126 = vld [vmem:[%s0 + $0x20] sm:$0xf]
    %v127 = vld [vmem:[%s0 + $0x24] sm:$0xf]
    %v128 = vld [vmem:[%s0 + $0x28] sm:$0xf]
    %v129 = vld [vmem:[%s0 + $0x2c] sm:$0xf]
    %v130 = vld [vmem:[%s0 + $0x30] sm:$0xf]
    %v131 = vld [vmem:[%s0 + $0x34] sm:$0xf]
    %v132 = vld [vmem:[%s0 + $0x38] sm:$0xf]
    %v133 = vld [vmem:[%s0 + $0x3c] sm:$0xf]
    %v134 = vld [vmem:[%s1] sm:$0x1]
    %v136 = vlaneseq
    %v137 = vshrl.u32 %v136, 7
    %v138 = vsub.s32 0, %v137
    %v139 = vrot.slane %v134, %v138
    %v145 = vunpack.c.l.b16 %v114
    %v146 = vunpack.c.l.b16 %v115
    %v147 = vunpack.c.l.b16 %v116
    %v148 = vunpack.c.l.b16 %v117
    %v149 = vpack.c.b16 %v146, %v145
    %v150 = vpack.c.b16 %v148, %v147
    %v169 = vunpack.c.l.b16 %v118
    %v170 = vunpack.c.l.b16 %v119
    %v171 = vunpack.c.l.b16 %v120
    %v172 = vunpack.c.l.b16 %v121
    %v173 = vunpack.c.l.b16 %v122
    %v174 = vunpack.c.l.b16 %v123
    %v175 = vunpack.c.l.b16 %v124
    %v176 = vunpack.c.l.b16 %v125
    %v177 = vunpack.c.l.b16 %v126
    %v178 = vunpack.c.l.b16 %v127
    %v179 = vunpack.c.l.b16 %v128
    %v180 = vunpack.c.l.b16 %v129
    %v181 = vunpack.c.l.b16 %v130
    %v182 = vunpack.c.l.b16 %v131
    %v183 = vunpack.c.l.b16 %v132
    %v184 = vunpack.c.l.b16 %v133
    %v185 = vpack.c.b16 %v170, %v169
    %v186 = vpack.c.b16 %v172, %v171
    %v187 = vpack.c.b16 %v174, %v173
    %v188 = vpack.c.b16 %v176, %v175
    %v189 = vpack.c.b16 %v178, %v177
    %v190 = vpack.c.b16 %v180, %v179
    %v191 = vpack.c.b16 %v182, %v181
    %v192 = vpack.c.b16 %v184, %v183
    %201 = vmatprep.subr.bf16.mxu0 0
    %202 = vmatpush1.bf16.msra.mxu0 %v185
    %203 = vmatprep.subr.bf16.mxu0 0
    %204 = vmatpush1.bf16.msra.mxu0 %v186
    %205 = vmatprep.subr.bf16.mxu0 0
    %206 = vmatpush1.bf16.msra.mxu0 %v187
    %207 = vmatprep.subr.bf16.mxu0 0
    %208 = vmatpush1.bf16.msra.mxu0 %v188
    %209 = vmatprep.subr.bf16.mxu0 0
    %210 = vmatpush1.bf16.msra.mxu0 %v189
    %211 = vmatprep.subr.bf16.mxu0 0
    %212 = vmatpush1.bf16.msra.mxu0 %v190
    %213 = vmatprep.subr.bf16.mxu0 0
    %214 = vmatpush1.bf16.msra.mxu0 %v191
    %215 = vmatprep.subr.bf16.mxu0 0
    %216 = vmatpush1.bf16.msra.mxu0 %v192
    %217 = vmatprep.subr.bf16.mxu0 0
    %218 = vmatpush1.bf16.msra.mxu0 0
    %219 = vmatprep.subr.bf16.mxu0 0
    %220 = vmatpush1.bf16.msra.mxu0 0
    %221 = vmatprep.subr.bf16.mxu0 0
    %222 = vmatpush1.bf16.msra.mxu0 0
    %223 = vmatprep.subr.bf16.mxu0 0
    %224 = vmatpush1.bf16.msra.mxu0 0
    %225 = vmatprep.subr.bf16.mxu0 0
    %226 = vmatpush1.bf16.msra.mxu0 0
    %227 = vmatprep.subr.bf16.mxu0 0
    %228 = vmatpush1.bf16.msra.mxu0 0
    %229 = vmatprep.subr.bf16.mxu0 0
    %230 = vmatpush1.bf16.msra.mxu0 0
    %231 = vmatprep.subr.bf16.mxu0 0
    %232 = vmatpush1.bf16.msra.mxu0 0
    %233 = vmatprep.mubr.bf16.mxu0 0
    %234 = vmatmul.mubr.bf16.gmra.mrb[0].mxu0 %v149
    %v235 = vpop.f32.mrb[0].mxu0
    %v236 = vadd.f32 %v139, %v235
    %v237 = vpop.f32.mrb[0].mxu0
    %v238 = vpop.f32.mrb[0].mxu0
    %v239 = vadd.f32 %v139, %v238
    %v240 = vpop.f32.mrb[0].mxu0
    %241 = vmatprep.mubr.bf16.mxu0 0
    %242 = vmatmul.mubr.bf16.gmra.mrb[0].mxu0 %v150
    %v243 = vpop.f32.mrb[0].mxu0
    %v244 = vadd.f32 %v139, %v243
    %v245 = vpop.f32.mrb[0].mxu0
    %v246 = vpop.f32.mrb[0].mxu0
    %v247 = vadd.f32 %v139, %v246
    %v248 = vpop.f32.mrb[0].mxu0
    %249 = vdwg.mxu0
    %v250 = vpack.c.bf16 %v239, %v236
    %v251 = vpack.c.bf16 %v247, %v244
    %v252 = vld [vmem:[%s2] sm:$0xf]
    %v253 = vld [vmem:[%s2 + $0x4] sm:$0xf]
    %v254 = vld [vmem:[%s2 + $0x8] sm:$0xf]
    %v255 = vld [vmem:[%s2 + $0xc] sm:$0xf]
    %v256 = vld [vmem:[%s2 + $0x10] sm:$0xf]
    %v257 = vld [vmem:[%s2 + $0x14] sm:$0xf]
    %v258 = vld [vmem:[%s2 + $0x18] sm:$0xf]
    %v259 = vld [vmem:[%s2 + $0x1c] sm:$0xf]
    %v260 = vld [vmem:[%s2 + $0x20] sm:$0xf]
    %v261 = vld [vmem:[%s2 + $0x24] sm:$0xf]
    %v262 = vld [vmem:[%s2 + $0x28] sm:$0xf]
    %v263 = vld [vmem:[%s2 + $0x2c] sm:$0xf]
    %v264 = vld [vmem:[%s2 + $0x30] sm:$0xf]
    %v265 = vld [vmem:[%s2 + $0x34] sm:$0xf]
    %v266 = vld [vmem:[%s2 + $0x38] sm:$0xf]
    %v267 = vld [vmem:[%s2 + $0x3c] sm:$0xf]
    %v268 = vld [vmem:[%s3] sm:$0x1]
    %v270 = vlaneseq
    %v271 = vshrl.u32 %v270, 7
    %v272 = vsub.s32 0, %v271
    %v273 = vrot.slane %v268, %v272
    %v291 = vunpack.c.l.b16 %v252
    %v292 = vunpack.c.l.b16 %v253
    %v293 = vunpack.c.l.b16 %v254
    %v294 = vunpack.c.l.b16 %v255
    %v295 = vunpack.c.l.b16 %v256
    %v296 = vunpack.c.l.b16 %v257
    %v297 = vunpack.c.l.b16 %v258
    %v298 = vunpack.c.l.b16 %v259
    %v299 = vunpack.c.l.b16 %v260
    %v300 = vunpack.c.l.b16 %v261
    %v301 = vunpack.c.l.b16 %v262
    %v302 = vunpack.c.l.b16 %v263
    %v303 = vunpack.c.l.b16 %v264
    %v304 = vunpack.c.l.b16 %v265
    %v305 = vunpack.c.l.b16 %v266
    %v306 = vunpack.c.l.b16 %v267
    %v307 = vpack.c.b16 %v292, %v291
    %v308 = vpack.c.b16 %v294, %v293
    %v309 = vpack.c.b16 %v296, %v295
    %v310 = vpack.c.b16 %v298, %v297
    %v311 = vpack.c.b16 %v300, %v299
    %v312 = vpack.c.b16 %v302, %v301
    %v313 = vpack.c.b16 %v304, %v303
    %v314 = vpack.c.b16 %v306, %v305
    %323 = vmatprep.subr.bf16.mxu0 0
    %324 = vmatpush1.bf16.msra.mxu0 %v307
    %325 = vmatprep.subr.bf16.mxu0 0
    %326 = vmatpush1.bf16.msra.mxu0 %v308
    %327 = vmatprep.subr.bf16.mxu0 0
    %328 = vmatpush1.bf16.msra.mxu0 %v309
    %329 = vmatprep.subr.bf16.mxu0 0
    %330 = vmatpush1.bf16.msra.mxu0 %v310
    %331 = vmatprep.subr.bf16.mxu0 0
    %332 = vmatpush1.bf16.msra.mxu0 %v311
    %333 = vmatprep.subr.bf16.mxu0 0
    %334 = vmatpush1.bf16.msra.mxu0 %v312
    %335 = vmatprep.subr.bf16.mxu0 0
    %336 = vmatpush1.bf16.msra.mxu0 %v313
    %337 = vmatprep.subr.bf16.mxu0 0
    %338 = vmatpush1.bf16.msra.mxu0 %v314
    %339 = vmatprep.subr.bf16.mxu0 0
    %340 = vmatpush1.bf16.msra.mxu0 0
    %341 = vmatprep.subr.bf16.mxu0 0
    %342 = vmatpush1.bf16.msra.mxu0 0
    %343 = vmatprep.subr.bf16.mxu0 0
    %344 = vmatpush1.bf16.msra.mxu0 0
    %345 = vmatprep.subr.bf16.mxu0 0
    %346 = vmatpush1.bf16.msra.mxu0 0
    %347 = vmatprep.subr.bf16.mxu0 0
    %348 = vmatpush1.bf16.msra.mxu0 0
    %349 = vmatprep.subr.bf16.mxu0 0
    %350 = vmatpush1.bf16.msra.mxu0 0
    %351 = vmatprep.subr.bf16.mxu0 0
    %352 = vmatpush1.bf16.msra.mxu0 0
    %353 = vmatprep.subr.bf16.mxu0 0
    %354 = vmatpush1.bf16.msra.mxu0 0
    %355 = vmatprep.mubr.bf16.mxu0 0
    %356 = vmatmul.mubr.bf16.gmra.mrb[0].mxu0 %v250
    %v357 = vpop.f32.mrb[0].mxu0
    %v358 = vadd.f32 %v273, %v357
    %v359 = vpop.f32.mrb[0].mxu0
    %v360 = vpop.f32.mrb[0].mxu0
    %v361 = vadd.f32 %v273, %v360
    %v362 = vpop.f32.mrb[0].mxu0
    %363 = vmatprep.mubr.bf16.mxu0 0
    %364 = vmatmul.mubr.bf16.gmra.mrb[0].mxu0 %v251
    %v365 = vpop.f32.mrb[0].mxu0
    %v366 = vadd.f32 %v273, %v365
    %v367 = vpop.f32.mrb[0].mxu0
    %v368 = vpop.f32.mrb[0].mxu0
    %v369 = vadd.f32 %v273, %v368
    %v370 = vpop.f32.mrb[0].mxu0
    %371 = vdwg.mxu0
    %372 = vst [vmem:[#allocation7] sm:$0xff] %v358
    %373 = vst [vmem:[#allocation7 + $0x8] sm:$0xff] %v361
    %374 = vst [vmem:[#allocation7 + $0x10] sm:$0xff] %v366
    %375 = vst [vmem:[#allocation7 + $0x18] sm:$0xff] %v369
    // Predicated region
    $region22: #{vision_encoder.2} parent=1 // pred_check
      _
    $region23: #{vision_encoder.2} parent=1 // pred_check_branch
      %377 = sbr.rel (0) target = $region25
    $region24: #{vision_encoder.2} parent=1 // pred_region
      %s379 = ssub.s32 512, 512
      %380 = vsyncadd [#allocation8], %s379
      %s381 = sshll.u32 [#allocation7], 4
      %s382 = int_to_ptr.vmem [resolvable:$true] %s381
      %387 = dma.vmem_to_hbm [thread:$0]  %s382, 512, %s6, [#allocation8], 128, 128, 8
    $region25: #{vision_encoder.2} parent=1 // pred_fallthru
      _
    // Predicated region
    $region26: #{vision_encoder.2} parent=1 // pred_check
      _
    $region27: #{vision_encoder.2} parent=1 // pred_check_branch
      %389 = sbr.rel (0) target = $region29
    $region28: #{vision_encoder.2} parent=1 // pred_region
      %390 = dma.done [#allocation8], 512
    $region29: #{vision_encoder.2} parent=1 // pred_fallthru
      _
    %391 = vsyncpa [#allocation8], 1

</llo_original>
